<compile_context>
chip_gen: v5e
topology: v5e:2x2
jax: 0.10.0
libtpu: 0.0.40
codegen_flags: <defaults>
</compile_context>

<pallas_src>
import functools
import math

import jax
import jax.numpy as jnp
import numpy as np
from jax.experimental import pallas as pl
from jax.experimental.pallas import tpu as pltpu


# -----------------------------------------------------------------------------
# Fused PtTransformerClsHead kernel (all levels, all conv layers, one call)
# -----------------------------------------------------------------------------
def _fused_cls_head_kernel(t0_ref, len_ref, x_ref, *refs,
                           tile_m, halo, K, compute_dtype):
    """One grid step = one row tile of one (level, batch) sequence.

    t0_ref  : SMEM (n_tiles,) int32   time index of the tile's first interior row
    len_ref : SMEM (n_tiles,) int32   valid length of the owning sequence
    x_ref   : VMEM (1, tile_in, Cin)  compute_dtype tile rows (halo included)
    refs    : w_0, b_0, ..., w_{L-1}, b_{L-1}, o_ref
              w_l : (K, Cin_l, Cout_l) whole-array VMEM resident (loaded once)
              b_l : (1, Cout_l) f32
              o_ref: (tile_m, Cout_pad) f32   lane-dense logits, interior rows only

    Per layer:  out = maybe_relu(((sum_k shift_k(x) @ W_k) + b) * valid_mask)
    which matches MaskedConv1D (stride=1, padding=K//2, zero pad, bias) followed
    by Identity norm + ReLU (with_ln=False), and the final cls conv (no ReLU).
    """
    o_ref = refs[-1]
    wb = refs[:-1]
    num_layers = len(wb) // 2
    pad = K // 2
    tile_in = tile_m + 2 * halo

    i = pl.program_id(0)
    t0 = t0_ref[i]
    seq_len = len_ref[i]

    # Absolute time index of every row in this tile (halo rows run past both
    # sequence ends).  MaskedConv1D validity = 0 <= t < seq_len, rebuilt from
    # SMEM scalars -- no (B, T, 1) float mask DMA stream.
    row = jax.lax.broadcasted_iota(jnp.int32, (tile_in, 1), 0)
    t_abs = row + (t0 - halo)
    valid = jnp.logical_and(t_abs >= 0, t_abs < seq_len)          # (tile_in, 1)

    # Layer-0 input masked in-kernel (zero padding of MaskedConv1D): the kernel
    # does not rely on the caller having pre-zeroed padded feature positions.
    h = jnp.where(valid, x_ref[0], 0).astype(compute_dtype)

    out_f32 = None
    for li in range(num_layers):
        w_ref, b_ref = wb[2 * li], wb[2 * li + 1]
        # Per-tap matmuls (no (M, K*Cin) im2col patch materialization).  The
        # tap shift is applied to the f32 matmul result with an XLU roll; the
        # roll wraps inside the tile, contaminating only halo rows, which are
        # never consumed for interior outputs because halo >= num_layers*(K//2).
        acc = jnp.dot(h, w_ref[pad], preferred_element_type=jnp.float32)
        for k in range(K):
            d = k - pad
            if d == 0:
                continue
            y = jnp.dot(h, w_ref[k], preferred_element_type=jnp.float32)
            acc = acc + pltpu.roll(y, shift=(-d) % tile_in, axis=0)
        acc = acc + b_ref[...]                        # (1, Cout) broadcast
        acc = jnp.where(valid, acc, 0.0)              # MaskedConv1D output mask
        if li < num_layers - 1:
            # ReLU epilogue on the f32 accumulator, carry bf16 activations.
            h = jnp.maximum(acc, 0.0).astype(compute_dtype)
        else:
            out_f32 = acc

    # Store only the interior rows (halo is a sublane-aligned multiple of 8).
    o_ref[...] = out_f32[halo:halo + tile_m, :].astype(o_ref.dtype)


# -----------------------------------------------------------------------------
# Parameter packing and tiled layout construction (wrapper side)
# -----------------------------------------------------------------------------
def pack_cls_head_params(head_params, cls_weight, cls_bias, *,
                         compute_dtype=jnp.bfloat16, lane_pad=128):
    """Pack PyTorch-layout conv params (Cout, Cin, K) into per-tap matmul form.

    Each layer becomes (W, b) with W : (K, Cin, Cout) in `compute_dtype` and
    b : (1, Cout) f32.  The final (cls) layer's output channels are zero-padded
    to a lane-dense multiple of `lane_pad` so the kernel stores are unmasked.
    """
    packed = []
    for w, b in head_params:
        cout, _, _ = w.shape
        packed.append((jnp.transpose(w, (2, 1, 0)).astype(compute_dtype),
                       b.reshape(1, cout).astype(jnp.float32)))
    cout, _, _ = cls_weight.shape
    cls_pad = max(lane_pad, ((cout + lane_pad - 1) // lane_pad) * lane_pad)
    w_t = jnp.pad(jnp.transpose(cls_weight, (2, 1, 0)),
                  ((0, 0), (0, 0), (0, cls_pad - cout)))
    b_t = jnp.pad(cls_bias, (0, cls_pad - cout)).reshape(1, cls_pad)
    packed.append((w_t.astype(compute_dtype), b_t.astype(jnp.float32)))
    return packed


def _round_up(x, m):
    return ((x + m - 1) // m) * m


def _tile_level(feat_l, *, tile_m, halo, compute_dtype):
    """Cut one FPN level (B, T, C) into overlapping row tiles with halos.

    Returns (tiles, t0, n_t, t_pad): tiles is (B * n_t, tile_m + 2*halo, C) in
    `compute_dtype`, batch-major then tile-major; halo rows past either sequence
    end are zero (they mirror MaskedConv1D's zero padding).
    """
    B, T, C = feat_l.shape
    n_t = pl.cdiv(T, tile_m)
    t_pad = n_t * tile_m
    tile_in = tile_m + 2 * halo
    x = feat_l.astype(compute_dtype)
    x = jnp.pad(x, ((0, 0), (halo, (t_pad - T) + halo), (0, 0)))
    tiles = jnp.stack([x[:, j * tile_m: j * tile_m + tile_in, :]
                       for j in range(n_t)], axis=1)        # (B, n_t, tile_in, C)
    tiles = tiles.reshape(B * n_t, tile_in, C)
    t0 = jnp.tile(jnp.arange(n_t, dtype=jnp.int32) * tile_m, B)
    return tiles, t0, n_t, t_pad


def _derive_vmem_limit(*, tile_in, tile_m, cin, cls_pad, max_c, packed,
                       compute_dtype):
    """VMEM budget derived from actual buffer sizes (+ headroom, v7x-safe cap)."""
    cd = np.dtype(compute_dtype).itemsize
    x_window = 2 * tile_in * cin * cd                 # double-buffered input tile
    o_window = 2 * tile_m * cls_pad * 4               # double-buffered output tile
    params = sum(int(np.prod(w.shape)) * np.dtype(w.dtype).itemsize
                 + int(np.prod(b.shape)) * 4 for w, b in packed)
    # live in-kernel values: activation h + per-tap f32 results + f32 acc (+ slack)
    work = tile_in * max_c * (cd + 3 * 4) * 2
    est = x_window + o_window + params + work + 8 * 2 ** 20   # ~8 MiB headroom
    return int(min(max(est, 32 * 2 ** 20), 56 * 2 ** 20))


def cls_head_forward(fpn_feats, fpn_lens, packed, *, kernel_size, num_classes,
                     tile_m=256, compute_dtype=jnp.bfloat16):
    """PtTransformerClsHead.forward for ALL FPN levels as ONE pallas_call.

    fpn_feats : list of (B, T_l, Cin) f32 level features.
    fpn_lens  : list of (B,) int valid lengths per level.
    returns   : list of (B, T_l, num_classes) f32 == PyTorch logits.permute(0,2,1)
    """
    assert kernel_size % 2 == 1, "MaskedConv1D head assumes an odd kernel size"
    assert len({f.shape[2] for f in fpn_feats}) == 1
    num_layers = len(packed)
    K = kernel_size
    Cin = fpn_feats[0].shape[2]
    cls_pad = packed[-1][0].shape[-1]
    max_c = max(max(w.shape[1], w.shape[2]) for w, _ in packed)

    # Every conv layer grows the receptive field by K//2 rows on each side;
    # round the halo up to a full 8-row sublane so interior slices stay aligned.
    halo = _round_up(max(1, num_layers * (K // 2)), 8)
    tile_m = _round_up(max(8, tile_m), 8)
    tile_in = tile_m + 2 * halo
    assert halo >= num_layers * (K // 2)  # roll wrap must stay inside the halo

    # ---- level-fused, tiled layout (cheap wrapper-side gathers) ----
    tiles, t0s, lens_rep, level_geom = [], [], [], []
    for feat_l, lens_l in zip(fpn_feats, fpn_lens):
        B, T_l, _ = feat_l.shape
        tl, t0, n_t, t_pad = _tile_level(feat_l, tile_m=tile_m, halo=halo,
                                         compute_dtype=compute_dtype)
        tiles.append(tl)
        t0s.append(t0)
        lens_rep.append(jnp.repeat(lens_l.astype(jnp.int32), n_t))
        level_geom.append((B, T_l, t_pad))
    x_tiles = jnp.concatenate(tiles, axis=0)          # (n_tiles, tile_in, Cin)
    tile_t0 = jnp.concatenate(t0s, axis=0)
    tile_len = jnp.concatenate(lens_rep, axis=0)
    n_tiles = x_tiles.shape[0]

    flat_params = [a for wb in packed for a in wb]
    kern = functools.partial(_fused_cls_head_kernel, tile_m=tile_m, halo=halo,
                             K=K, compute_dtype=compute_dtype)

    # Weights/biases: whole-array VMEM residents -> DMA'd into VMEM once for the
    # whole grid, single buffer (no per-step double-buffered weight footprint).
    weight_spec = pl.BlockSpec(memory_space=pltpu.MemorySpace.VMEM)

    grid_spec = pltpu.PrefetchScalarGridSpec(
        num_scalar_prefetch=2,                        # tile_t0, tile_len -> SMEM
        grid=(n_tiles,),                              # independent row tiles
        in_specs=[pl.BlockSpec((1, tile_in, Cin), lambda i, *_: (i, 0, 0))] +
                 [weight_spec] * len(flat_params),
        out_specs=pl.BlockSpec((tile_m, cls_pad), lambda i, *_: (i, 0)),
    )

    vmem_limit = _derive_vmem_limit(tile_in=tile_in, tile_m=tile_m, cin=Cin,
                                    cls_pad=cls_pad, max_c=max_c, packed=packed,
                                    compute_dtype=compute_dtype)

    out_flat = pl.pallas_call(
        kern,
        out_shape=jax.ShapeDtypeStruct((n_tiles * tile_m, cls_pad), jnp.float32),
        grid_spec=grid_spec,
        compiler_params=pltpu.CompilerParams(
            dimension_semantics=("parallel",),        # shards tiles across TCs
            vmem_limit_bytes=vmem_limit,
        ),
    )(tile_t0, tile_len, x_tiles, *flat_params)

    # ---- scatter the lane-dense tile outputs back to per-level logits ----
    outs, row = [], 0
    for B, T_l, t_pad in level_geom:
        n_rows = B * t_pad
        lvl = out_flat[row: row + n_rows].reshape(B, t_pad, cls_pad)
        outs.append(lvl[:, :T_l, :num_classes])
        row += n_rows
    return outs


# -----------------------------------------------------------------------------
# Plain-JAX helpers: preprocessing, stand-in backbone, and a reference head
# -----------------------------------------------------------------------------
def masked_conv1d_ref(x_btc, mask_bt, weight, bias, *, apply_relu=False):
    """Plain-JAX MaskedConv1D (stride=1, padding=K//2) reference / stand-in."""
    B, T, _ = x_btc.shape
    Cout, _, K = weight.shape
    pad = K // 2
    xp = jnp.pad(x_btc, ((0, 0), (pad, pad), (0, 0)))
    out = jnp.zeros((B, T, Cout), jnp.float32)
    for k in range(K):
        out = out + jnp.einsum("btc,oc->bto", xp[:, k:k + T, :], weight[:, :, k],
                               precision="highest")
    out = out + bias
    out = out * mask_bt[..., None].astype(out.dtype)
    if apply_relu:
        out = jnp.maximum(out, 0.0)
    return out


def cls_head_ref(feat, mask, head_params, cls_w, cls_b):
    cur = feat
    for w, b in head_params:
        cur = masked_conv1d_ref(cur, mask, w, b, apply_relu=True)
    return masked_conv1d_ref(cur, mask, cls_w, cls_b, apply_relu=False)


def preprocessing(feats_list, max_seq_len, padding_val=0.0):
    """PtTransformer.preprocessing (training-style batching) in plain JAX."""
    B = len(feats_list)
    C = feats_list[0].shape[0]
    lens = jnp.asarray([f.shape[-1] for f in feats_list], jnp.int32)
    batched = jnp.full((B, C, max_seq_len), padding_val, jnp.float32)
    for i, f in enumerate(feats_list):
        batched = batched.at[i, :, : f.shape[-1]].set(f.astype(jnp.float32))
    masks = jnp.arange(max_seq_len)[None, :] < lens[:, None]      # (B, T) bool
    return batched, masks, lens


if __name__ == "__main__":
    key = jax.random.PRNGKey(0)

    # Small config consistent with PtTransformer.__init__ (don't tune/benchmark
    # at these shapes: real ActionFormer sizes are T~2304, C~512, tile_m~256+).
    input_dim = 4
    fpn_dim = 32
    head_dim = 32
    num_classes = 8
    max_seq_len = 16
    scale_factor = 2
    backbone_arch_last = 1          # -> 2 FPN levels
    head_kernel_size = 3
    head_num_layers = 3             # 2 head convs + cls conv
    prior_prob = 0.01
    empty_cls = []

    k_stem, k_h0, k_h1, k_cls, k_f0, k_f1 = jax.random.split(key, 6)

    def conv_w(k, cout, cin, ks):
        scale = 1.0 / math.sqrt(cin * ks)
        return jax.random.normal(k, (cout, cin, ks), jnp.float32) * scale

    # TODO(synk): make_backbone / make_neck / make_generator definitions are not
    # part of the reference; a single masked-conv embedding + stride-2
    # subsampling stands in for the conv backbone + FPN so the fully specified
    # PtTransformerClsHead path can run end to end.
    stem_w = conv_w(k_stem, fpn_dim, input_dim, 3)
    stem_b = jnp.zeros((fpn_dim,), jnp.float32)

    # PtTransformerClsHead parameters (with_ln=False -> biased convs, Identity norm)
    head_params = [
        (conv_w(k_h0, head_dim, fpn_dim, head_kernel_size),
         jnp.zeros((head_dim,), jnp.float32)),
        (conv_w(k_h1, head_dim, head_dim, head_kernel_size),
         jnp.zeros((head_dim,), jnp.float32)),
    ]
    bias_value = -math.log((1.0 - prior_prob) / prior_prob)
    cls_b = jnp.full((num_classes,), bias_value, jnp.float32)
    for idx in empty_cls:
        cls_b = cls_b.at[idx].set(-math.log((1.0 - 1e-6) / 1e-6))
    cls_w = conv_w(k_cls, num_classes, head_dim, head_kernel_size)

    # ---- video_list-like inputs: 2 videos with different feature lengths ----
    feats0 = jax.random.normal(k_f0, (input_dim, 16), jnp.float32)
    feats1 = jax.random.normal(k_f1, (input_dim, 12), jnp.float32)
    batched_inputs, batched_masks, _feat_lens = preprocessing(
        [feats0, feats1], max_seq_len)

    # NCT -> (B, T, C) layout (channels on lanes)
    x_btc = jnp.transpose(batched_inputs, (0, 2, 1))

    # Stand-in backbone/neck (see TODO above): masked embed + pyramid subsampling.
    embd = masked_conv1d_ref(x_btc, batched_masks, stem_w, stem_b, apply_relu=True)
    fpn_feats, fpn_masks, fpn_lens = [], [], []
    cur_f, cur_m = embd, batched_masks
    for _lvl in range(backbone_arch_last + 1):
        fpn_feats.append(cur_f)
        fpn_masks.append(cur_m)
        fpn_lens.append(jnp.sum(cur_m, axis=-1).astype(jnp.int32))
        cur_f = cur_f[:, ::scale_factor, :]
        cur_m = cur_m[:, ::scale_factor]

    # ---- PtTransformerClsHead.forward: ALL FPN levels in ONE fused pallas_call ----
    # (1) float32 compute pass: validates the per-tap / roll / halo / packing
    #     algebra at tight tolerance.
    packed_f32 = pack_cls_head_params(head_params, cls_w, cls_b,
                                      compute_dtype=jnp.float32)
    out_f32 = cls_head_forward(fpn_feats, fpn_lens, packed_f32,
                               kernel_size=head_kernel_size,
                               num_classes=num_classes,
                               tile_m=8, compute_dtype=jnp.float32)
    # (2) bf16 production pass (MXU-native inputs/weights, f32 accumulation).
    packed_bf16 = pack_cls_head_params(head_params, cls_w, cls_b,
                                       compute_dtype=jnp.bfloat16)
    out_cls_logits = cls_head_forward(fpn_feats, fpn_lens, packed_bf16,
                                      kernel_size=head_kernel_size,
                                      num_classes=num_classes,
                                      tile_m=8, compute_dtype=jnp.bfloat16)

    for o in out_f32 + out_cls_logits:
        jax.block_until_ready(o)

    # ---- Correctness check vs. a plain-JAX reference of the cls head ----
    for lvl, (feat, mask) in enumerate(zip(fpn_feats, fpn_masks)):
        ref = cls_head_ref(feat, mask, head_params, cls_w, cls_b)
        err32 = float(jnp.max(jnp.abs(out_f32[lvl] - ref)))
        assert err32 < 1e-3, f"level {lvl} (f32 compute): max |err| = {err32}"
        err16 = float(jnp.max(jnp.abs(out_cls_logits[lvl] - ref)))
        assert err16 < 1e-1, f"level {lvl} (bf16 compute): max |err| = {err16}"

    # (B, T_l, num_classes): equals PyTorch cur_logits.permute(0, 2, 1)
    assert out_cls_logits[0].shape == (2, 16, num_classes)
    assert out_cls_logits[1].shape == (2, 8, num_classes)

    # fpn_masks here are already (B, T) == PyTorch mask.squeeze(1)
    # TODO(synk): training losses (construct_hungarian) and inference/NMS
    # (point generator, batched_nms) depend on code not provided in the reference.
    print("KERNEL_OK")
</pallas_src>

<mosaic_0001>
module attributes {stable_mosaic.version = 11 : i64} {
  func.func @_fused_cls_head_kernel(%arg0: i32, %arg1: memref<6xi32, #tpu.memory_space<smem>>, %arg2: memref<6xi32, #tpu.memory_space<smem>>, %arg3: memref<1x24x32xf32, #tpu.memory_space<vmem>>, %arg4: memref<3x32x32xf32, #tpu.memory_space<vmem>>, %arg5: memref<1x32xf32, #tpu.memory_space<vmem>>, %arg6: memref<3x32x32xf32, #tpu.memory_space<vmem>>, %arg7: memref<1x32xf32, #tpu.memory_space<vmem>>, %arg8: memref<3x32x128xf32, #tpu.memory_space<vmem>>, %arg9: memref<1x128xf32, #tpu.memory_space<vmem>>, %arg10: memref<8x128xf32, #tpu.memory_space<vmem>>) attributes {dimension_semantics = [#tpu.dimension_semantics<parallel>], iteration_bounds = array<i64: 6>, scalar_prefetch = 2 : i64, scratch_operands = 0 : i64, tpu.core_type = #tpu.core_type<tc>, window_params = [{transform_indices = @transform_0, window_bounds = array<i64: 1, 24, 32>}, {pipeline_mode = #tpu.pipeline_mode<synchronous>, transform_indices = @transform_1, window_bounds = array<i64: 3, 32, 32>}, {pipeline_mode = #tpu.pipeline_mode<synchronous>, transform_indices = @transform_2, window_bounds = array<i64: 1, 32>}, {pipeline_mode = #tpu.pipeline_mode<synchronous>, transform_indices = @transform_3, window_bounds = array<i64: 3, 32, 32>}, {pipeline_mode = #tpu.pipeline_mode<synchronous>, transform_indices = @transform_4, window_bounds = array<i64: 1, 32>}, {pipeline_mode = #tpu.pipeline_mode<synchronous>, transform_indices = @transform_5, window_bounds = array<i64: 3, 32, 128>}, {pipeline_mode = #tpu.pipeline_mode<synchronous>, transform_indices = @transform_6, window_bounds = array<i64: 1, 128>}, {transform_indices = @transform_7, window_bounds = array<i64: 8, 128>}]} {
    %0 = arith.index_cast %arg0 : i32 to index
    %1 = memref.load %arg1[%0] : memref<6xi32, #tpu.memory_space<smem>>
    %2 = arith.index_cast %arg0 : i32 to index
    %3 = memref.load %arg2[%2] : memref<6xi32, #tpu.memory_space<smem>>
    %4 = tpu.iota {dimensions = array<i32: 0>} : vector<24x1xi32>
    %c8_i32 = arith.constant 8 : i32
    %5 = arith.subi %1, %c8_i32 : i32
    %6 = vector.broadcast %5 : i32 to vector<24x1xi32>
    %7 = arith.addi %4, %6 : vector<24x1xi32>
    %c0_i32 = arith.constant 0 : i32
    %8 = vector.broadcast %c0_i32 : i32 to vector<24x1xi32>
    %9 = arith.cmpi sge, %7, %8 : vector<24x1xi32>
    %10 = vector.broadcast %3 : i32 to vector<24x1xi32>
    %11 = arith.cmpi slt, %7, %10 : vector<24x1xi32>
    %12 = arith.andi %9, %11 : vector<24x1xi1>
    %c0 = arith.constant 0 : index
    %c0_0 = arith.constant 0 : index
    %c0_1 = arith.constant 0 : index
    %13 = vector.load %arg3[%c0, %c0_0, %c0_1] : memref<1x24x32xf32, #tpu.memory_space<vmem>>, vector<1x24x32xf32>
    %14 = vector.shape_cast %13 : vector<1x24x32xf32> to vector<24x32xf32>
    %c0_i32_2 = arith.constant 0 : i32
    %15 = arith.sitofp %c0_i32_2 : i32 to f32
    %16 = vector.shape_cast %12 : vector<24x1xi1> to vector<24x1xi1>
    %17 = vector.broadcast %16 : vector<24x1xi1> to vector<24x32xi1>
    %18 = vector.broadcast %15 : f32 to vector<24x32xf32>
    %19 = arith.select %17, %14, %18 : vector<24x32xi1>, vector<24x32xf32>
    %c1 = arith.constant 1 : index
    %c0_3 = arith.constant 0 : index
    %c0_4 = arith.constant 0 : index
    %20 = vector.load %arg4[%c1, %c0_3, %c0_4] : memref<3x32x32xf32, #tpu.memory_space<vmem>>, vector<1x32x32xf32>
    %21 = vector.shape_cast %20 : vector<1x32x32xf32> to vector<32x32xf32>
    %cst = arith.constant dense<0.000000e+00> : vector<24x32xf32>
    %22 = tpu.matmul %19, %21, %cst {dimension_numbers = #tpu.dot_dimension_numbers<[1], [0], [0], [1], [0, 0, 1, 1], [], []>} : vector<24x32xf32>, vector<32x32xf32>, vector<24x32xf32> -> vector<24x32xf32>
    %c0_5 = arith.constant 0 : index
    %c0_6 = arith.constant 0 : index
    %c0_7 = arith.constant 0 : index
    %23 = vector.load %arg4[%c0_5, %c0_6, %c0_7] : memref<3x32x32xf32, #tpu.memory_space<vmem>>, vector<1x32x32xf32>
    %24 = vector.shape_cast %23 : vector<1x32x32xf32> to vector<32x32xf32>
    %cst_8 = arith.constant dense<0.000000e+00> : vector<24x32xf32>
    %25 = tpu.matmul %19, %24, %cst_8 {dimension_numbers = #tpu.dot_dimension_numbers<[1], [0], [0], [1], [0, 0, 1, 1], [], []>} : vector<24x32xf32>, vector<32x32xf32>, vector<24x32xf32> -> vector<24x32xf32>
    %c1_i32 = arith.constant 1 : i32
    %26 = tpu.dynamic_rotate %25 by %c1_i32 dim 0 : vector<24x32xf32>, i32 -> vector<24x32xf32>
    %27 = arith.addf %22, %26 : vector<24x32xf32>
    %c2 = arith.constant 2 : index
    %c0_9 = arith.constant 0 : index
    %c0_10 = arith.constant 0 : index
    %28 = vector.load %arg4[%c2, %c0_9, %c0_10] : memref<3x32x32xf32, #tpu.memory_space<vmem>>, vector<1x32x32xf32>
    %29 = vector.shape_cast %28 : vector<1x32x32xf32> to vector<32x32xf32>
    %cst_11 = arith.constant dense<0.000000e+00> : vector<24x32xf32>
    %30 = tpu.matmul %19, %29, %cst_11 {dimension_numbers = #tpu.dot_dimension_numbers<[1], [0], [0], [1], [0, 0, 1, 1], [], []>} : vector<24x32xf32>, vector<32x32xf32>, vector<24x32xf32> -> vector<24x32xf32>
    %c23_i32 = arith.constant 23 : i32
    %31 = tpu.dynamic_rotate %30 by %c23_i32 dim 0 : vector<24x32xf32>, i32 -> vector<24x32xf32>
    %32 = arith.addf %27, %31 : vector<24x32xf32>
    %c0_12 = arith.constant 0 : index
    %c0_13 = arith.constant 0 : index
    %33 = vector.load %arg5[%c0_12, %c0_13] : memref<1x32xf32, #tpu.memory_space<vmem>>, vector<1x32xf32>
    %34 = vector.broadcast %33 : vector<1x32xf32> to vector<24x32xf32>
    %35 = arith.addf %32, %34 : vector<24x32xf32>
    %cst_14 = arith.constant 0.000000e+00 : f32
    %36 = vector.shape_cast %12 : vector<24x1xi1> to vector<24x1xi1>
    %37 = vector.broadcast %36 : vector<24x1xi1> to vector<24x32xi1>
    %38 = vector.broadcast %cst_14 : f32 to vector<24x32xf32>
    %39 = arith.select %37, %35, %38 : vector<24x32xi1>, vector<24x32xf32>
    %cst_15 = arith.constant 0.000000e+00 : f32
    %40 = vector.broadcast %cst_15 : f32 to vector<24x32xf32>
    %41 = arith.maximumf %39, %40 : vector<24x32xf32>
    %c1_16 = arith.constant 1 : index
    %c0_17 = arith.constant 0 : index
    %c0_18 = arith.constant 0 : index
    %42 = vector.load %arg6[%c1_16, %c0_17, %c0_18] : memref<3x32x32xf32, #tpu.memory_space<vmem>>, vector<1x32x32xf32>
    %43 = vector.shape_cast %42 : vector<1x32x32xf32> to vector<32x32xf32>
    %cst_19 = arith.constant dense<0.000000e+00> : vector<24x32xf32>
    %44 = tpu.matmul %41, %43, %cst_19 {dimension_numbers = #tpu.dot_dimension_numbers<[1], [0], [0], [1], [0, 0, 1, 1], [], []>} : vector<24x32xf32>, vector<32x32xf32>, vector<24x32xf32> -> vector<24x32xf32>
    %c0_20 = arith.constant 0 : index
    %c0_21 = arith.constant 0 : index
    %c0_22 = arith.constant 0 : index
    %45 = vector.load %arg6[%c0_20, %c0_21, %c0_22] : memref<3x32x32xf32, #tpu.memory_space<vmem>>, vector<1x32x32xf32>
    %46 = vector.shape_cast %45 : vector<1x32x32xf32> to vector<32x32xf32>
    %cst_23 = arith.constant dense<0.000000e+00> : vector<24x32xf32>
    %47 = tpu.matmul %41, %46, %cst_23 {dimension_numbers = #tpu.dot_dimension_numbers<[1], [0], [0], [1], [0, 0, 1, 1], [], []>} : vector<24x32xf32>, vector<32x32xf32>, vector<24x32xf32> -> vector<24x32xf32>
    %c1_i32_24 = arith.constant 1 : i32
    %48 = tpu.dynamic_rotate %47 by %c1_i32_24 dim 0 : vector<24x32xf32>, i32 -> vector<24x32xf32>
    %49 = arith.addf %44, %48 : vector<24x32xf32>
    %c2_25 = arith.constant 2 : index
    %c0_26 = arith.constant 0 : index
    %c0_27 = arith.constant 0 : index
    %50 = vector.load %arg6[%c2_25, %c0_26, %c0_27] : memref<3x32x32xf32, #tpu.memory_space<vmem>>, vector<1x32x32xf32>
    %51 = vector.shape_cast %50 : vector<1x32x32xf32> to vector<32x32xf32>
    %cst_28 = arith.constant dense<0.000000e+00> : vector<24x32xf32>
    %52 = tpu.matmul %41, %51, %cst_28 {dimension_numbers = #tpu.dot_dimension_numbers<[1], [0], [0], [1], [0, 0, 1, 1], [], []>} : vector<24x32xf32>, vector<32x32xf32>, vector<24x32xf32> -> vector<24x32xf32>
    %c23_i32_29 = arith.constant 23 : i32
    %53 = tpu.dynamic_rotate %52 by %c23_i32_29 dim 0 : vector<24x32xf32>, i32 -> vector<24x32xf32>
    %54 = arith.addf %49, %53 : vector<24x32xf32>
    %c0_30 = arith.constant 0 : index
    %c0_31 = arith.constant 0 : index
    %55 = vector.load %arg7[%c0_30, %c0_31] : memref<1x32xf32, #tpu.memory_space<vmem>>, vector<1x32xf32>
    %56 = vector.broadcast %55 : vector<1x32xf32> to vector<24x32xf32>
    %57 = arith.addf %54, %56 : vector<24x32xf32>
    %cst_32 = arith.constant 0.000000e+00 : f32
    %58 = vector.shape_cast %12 : vector<24x1xi1> to vector<24x1xi1>
    %59 = vector.broadcast %58 : vector<24x1xi1> to vector<24x32xi1>
    %60 = vector.broadcast %cst_32 : f32 to vector<24x32xf32>
    %61 = arith.select %59, %57, %60 : vector<24x32xi1>, vector<24x32xf32>
    %cst_33 = arith.constant 0.000000e+00 : f32
    %62 = vector.broadcast %cst_33 : f32 to vector<24x32xf32>
    %63 = arith.maximumf %61, %62 : vector<24x32xf32>
    %c1_34 = arith.constant 1 : index
    %c0_35 = arith.constant 0 : index
    %c0_36 = arith.constant 0 : index
    %64 = vector.load %arg8[%c1_34, %c0_35, %c0_36] : memref<3x32x128xf32, #tpu.memory_space<vmem>>, vector<1x32x128xf32>
    %65 = vector.shape_cast %64 : vector<1x32x128xf32> to vector<32x128xf32>
    %cst_37 = arith.constant dense<0.000000e+00> : vector<24x128xf32>
    %66 = tpu.matmul %63, %65, %cst_37 {dimension_numbers = #tpu.dot_dimension_numbers<[1], [0], [0], [1], [0, 0, 1, 1], [], []>} : vector<24x32xf32>, vector<32x128xf32>, vector<24x128xf32> -> vector<24x128xf32>
    %c0_38 = arith.constant 0 : index
    %c0_39 = arith.constant 0 : index
    %c0_40 = arith.constant 0 : index
    %67 = vector.load %arg8[%c0_38, %c0_39, %c0_40] : memref<3x32x128xf32, #tpu.memory_space<vmem>>, vector<1x32x128xf32>
    %68 = vector.shape_cast %67 : vector<1x32x128xf32> to vector<32x128xf32>
    %cst_41 = arith.constant dense<0.000000e+00> : vector<24x128xf32>
    %69 = tpu.matmul %63, %68, %cst_41 {dimension_numbers = #tpu.dot_dimension_numbers<[1], [0], [0], [1], [0, 0, 1, 1], [], []>} : vector<24x32xf32>, vector<32x128xf32>, vector<24x128xf32> -> vector<24x128xf32>
    %c1_i32_42 = arith.constant 1 : i32
    %70 = tpu.dynamic_rotate %69 by %c1_i32_42 dim 0 : vector<24x128xf32>, i32 -> vector<24x128xf32>
    %71 = arith.addf %66, %70 : vector<24x128xf32>
    %c2_43 = arith.constant 2 : index
    %c0_44 = arith.constant 0 : index
    %c0_45 = arith.constant 0 : index
    %72 = vector.load %arg8[%c2_43, %c0_44, %c0_45] : memref<3x32x128xf32, #tpu.memory_space<vmem>>, vector<1x32x128xf32>
    %73 = vector.shape_cast %72 : vector<1x32x128xf32> to vector<32x128xf32>
    %cst_46 = arith.constant dense<0.000000e+00> : vector<24x128xf32>
    %74 = tpu.matmul %63, %73, %cst_46 {dimension_numbers = #tpu.dot_dimension_numbers<[1], [0], [0], [1], [0, 0, 1, 1], [], []>} : vector<24x32xf32>, vector<32x128xf32>, vector<24x128xf32> -> vector<24x128xf32>
    %c23_i32_47 = arith.constant 23 : i32
    %75 = tpu.dynamic_rotate %74 by %c23_i32_47 dim 0 : vector<24x128xf32>, i32 -> vector<24x128xf32>
    %76 = arith.addf %71, %75 : vector<24x128xf32>
    %c0_48 = arith.constant 0 : index
    %c0_49 = arith.constant 0 : index
    %77 = vector.load %arg9[%c0_48, %c0_49] : memref<1x128xf32, #tpu.memory_space<vmem>>, vector<1x128xf32>
    %78 = vector.broadcast %77 : vector<1x128xf32> to vector<24x128xf32>
    %79 = arith.addf %76, %78 : vector<24x128xf32>
    %cst_50 = arith.constant 0.000000e+00 : f32
    %80 = vector.shape_cast %12 : vector<24x1xi1> to vector<24x1xi1>
    %81 = vector.broadcast %80 : vector<24x1xi1> to vector<24x128xi1>
    %82 = vector.broadcast %cst_50 : f32 to vector<24x128xf32>
    %83 = arith.select %81, %79, %82 : vector<24x128xi1>, vector<24x128xf32>
    %84 = vector.extract_strided_slice %83 {offsets = [8, 0], sizes = [8, 128], strides = [1, 1]} : vector<24x128xf32> to vector<8x128xf32>
    %c0_51 = arith.constant 0 : index
    %c0_52 = arith.constant 0 : index
    %85 = vector.load %arg10[%c0_51, %c0_52] : memref<8x128xf32, #tpu.memory_space<vmem>>, vector<8x128xf32>
    tpu.vector_store %arg10[%c0_51, %c0_52], %84 {strides = array<i32>} : memref<8x128xf32, #tpu.memory_space<vmem>>, vector<8x128xf32>,
    return
  }
  func.func @transform_0(%arg0: i32, %arg1: memref<6xi32, #tpu.memory_space<smem>>, %arg2: memref<6xi32, #tpu.memory_space<smem>>) -> (i32, i32, i32) {
    %c0_i32 = arith.constant 0 : i32
    %c0_i32_0 = arith.constant 0 : i32
    %c0_i32_1 = arith.constant 0 : i32
    return %arg0, %c0_i32, %c0_i32_0 : i32, i32, i32
  }
  func.func @transform_1(%arg0: i32, %arg1: memref<6xi32, #tpu.memory_space<smem>>, %arg2: memref<6xi32, #tpu.memory_space<smem>>) -> (i32, i32, i32) {
    %c0_i32 = arith.constant 0 : i32
    %c0_i32_0 = arith.constant 0 : i32
    %c0_i32_1 = arith.constant 0 : i32
    %c0_i32_2 = arith.constant 0 : i32
    return %c0_i32, %c0_i32_0, %c0_i32_1 : i32, i32, i32
  }
  func.func @transform_2(%arg0: i32, %arg1: memref<6xi32, #tpu.memory_space<smem>>, %arg2: memref<6xi32, #tpu.memory_space<smem>>) -> (i32, i32) {
    %c0_i32 = arith.constant 0 : i32
    %c0_i32_0 = arith.constant 0 : i32
    %c0_i32_1 = arith.constant 0 : i32
    return %c0_i32, %c0_i32_0 : i32, i32
  }
  func.func @transform_3(%arg0: i32, %arg1: memref<6xi32, #tpu.memory_space<smem>>, %arg2: memref<6xi32, #tpu.memory_space<smem>>) -> (i32, i32, i32) {
    %c0_i32 = arith.constant 0 : i32
    %c0_i32_0 = arith.constant 0 : i32
    %c0_i32_1 = arith.constant 0 : i32
    %c0_i32_2 = arith.constant 0 : i32
    return %c0_i32, %c0_i32_0, %c0_i32_1 : i32, i32, i32
  }
  func.func @transform_4(%arg0: i32, %arg1: memref<6xi32, #tpu.memory_space<smem>>, %arg2: memref<6xi32, #tpu.memory_space<smem>>) -> (i32, i32) {
    %c0_i32 = arith.constant 0 : i32
    %c0_i32_0 = arith.constant 0 : i32
    %c0_i32_1 = arith.constant 0 : i32
    return %c0_i32, %c0_i32_0 : i32, i32
  }
  func.func @transform_5(%arg0: i32, %arg1: memref<6xi32, #tpu.memory_space<smem>>, %arg2: memref<6xi32, #tpu.memory_space<smem>>) -> (i32, i32, i32) {
    %c0_i32 = arith.constant 0 : i32
    %c0_i32_0 = arith.constant 0 : i32
    %c0_i32_1 = arith.constant 0 : i32
    %c0_i32_2 = arith.constant 0 : i32
    return %c0_i32, %c0_i32_0, %c0_i32_1 : i32, i32, i32
  }
  func.func @transform_6(%arg0: i32, %arg1: memref<6xi32, #tpu.memory_space<smem>>, %arg2: memref<6xi32, #tpu.memory_space<smem>>) -> (i32, i32) {
    %c0_i32 = arith.constant 0 : i32
    %c0_i32_0 = arith.constant 0 : i32
    %c0_i32_1 = arith.constant 0 : i32
    return %c0_i32, %c0_i32_0 : i32, i32
  }
  func.func @transform_7(%arg0: i32, %arg1: memref<6xi32, #tpu.memory_space<smem>>, %arg2: memref<6xi32, #tpu.memory_space<smem>>) -> (i32, i32) {
    %c0_i32 = arith.constant 0 : i32
    %c0_i32_0 = arith.constant 0 : i32
    return %arg0, %c0_i32 : i32, i32
  }
}

</mosaic_0001>

<llo_original>
// kernel: tpu_custom_call.1
$region0: #{tpu_custom_call.1}
  #allocation0 [shape = 'u32[]', space=smem, size = 0x4, offset = 0x4, fixed_abs, tag = 'smem constant byte address 0x4 - core index']
  #allocation1 [shape = 'u32[72,128]{1,0:T(1,128)}', space=vmem, size = 0x9000, scoped, tag = 'internal scratch']
  #allocation2 [shape = 's32[1]{0}', space=sflag, size = 0x4, scoped, tag = 'scoped memory for tpu_custom_call.1']
  #allocation3 [shape = 'u8[512]{0}', space=smem, size = 0x200, scoped, tag = 'prefetched SMEM operand 0']
  #allocation4 [shape = 'u8[512]{0}', space=smem, size = 0x200, scoped, tag = 'prefetched SMEM operand 1']
  %s0 = inlined_call_operand.hbm [shape: s32[6], index: 0, kind: input, shape index: {}]
  %s1 = inlined_call_operand.hbm [shape: s32[6], index: 1, kind: input, shape index: {}]
  %s2 = inlined_call_operand.hbm [shape: f32[6,24,32], index: 2, kind: input, shape index: {}]
  %s3 = inlined_call_operand.hbm [shape: f32[3,32,32], index: 3, kind: input, shape index: {}]
  %s4 = inlined_call_operand.vmem [shape: f32[1,32], index: 4, kind: input, shape index: {}]
  %s5 = inlined_call_operand.hbm [shape: f32[3,32,32], index: 5, kind: input, shape index: {}]
  %s6 = inlined_call_operand.vmem [shape: f32[1,32], index: 6, kind: input, shape index: {}]
  %s7 = inlined_call_operand.hbm [shape: f32[3,32,128], index: 7, kind: input, shape index: {}]
  %s8 = inlined_call_operand.vmem [shape: f32[1,128], index: 8, kind: input, shape index: {}]
  %s9 = inlined_call_operand.hbm [shape: f32[48,128], index: 9, kind: output, shape index: {}]
  %s10 = sld [smem:[#allocation0]]
  $region77: #{tpu_custom_call.1} parent=0
    _
  %s12 = ssub.s32 1, %s10
  %s13 = scalar_select 0, %s12, %s10
  %s15 = sshll.u32 %s0, 4
  %s16 = int_to_ptr.hbm [resolvable:$true] %s15
  %18 = dma.hbm_to_smem %s16, 16, [#allocation3], [#allocation2]
  %s20 = sshll.u32 %s1, 4
  %s21 = int_to_ptr.hbm [resolvable:$true] %s20
  %23 = dma.hbm_to_smem %s21, 16, [#allocation4], [#allocation2]
  %25 = dma.done [#allocation2], 32
  %26 = sfence
  $region1: #{tpu_custom_call.1} parent=0
    #allocation5 [shape = 'u8[24576]{0}', space=vmem, size = 0x6000, scoped, tag = 'input window, operand 2']
    #allocation6 [shape = 's32[2]{0}', space=sflag, size = 0x8, scoped, tag = 'scoped memory for tpu_custom_call.1']
    #allocation7 [shape = 's32[2]{0}', space=sflag, size = 0x8, scoped, tag = 'scoped memory for tpu_custom_call.1']
    #allocation8 [shape = 'u8[49152]{0}', space=vmem, size = 0xc000, scoped, tag = 'input window, operand 3, single buffered']
    #allocation9 [shape = 's32[1]{0}', space=sflag, size = 0x4, scoped, tag = 'scoped memory for tpu_custom_call.1']
    #allocation10 [shape = 'u8[49152]{0}', space=vmem, size = 0xc000, scoped, tag = 'input window, operand 5, single buffered']
    #allocation11 [shape = 'u8[49152]{0}', space=vmem, size = 0xc000, scoped, tag = 'input window, operand 7, single buffered']
    #allocation12 [shape = 's32[1]{0}', space=sflag, size = 0x4, scoped, tag = 'scoped memory for tpu_custom_call.1']
    #allocation13 [shape = 'u8[8192]{0}', space=vmem, size = 0x2000, scoped, tag = 'output window, operand 0']
    %27 = vsyncpa [#allocation6], 0
    %s28 = scalar_lea.sflag [#allocation6], 1
    %29 = vsyncpa %s28, 0
    %30 = vsyncpa [#allocation9], 0
    %31 = vsyncpa [#allocation12], 0
    %32 = vsyncpa [#allocation7], 0
    %s33 = scalar_lea.sflag [#allocation7], 1
    %34 = vsyncpa %s33, 0
    loop: start=0, step=1, limit=8
    $region2: #{tpu_custom_call.1} parent=1 // loop_pre_header
      _
    $region3: #{tpu_custom_call.1} parent=1 // loop_header
      %s36 = sphi 0, %s40
      %p37 = scmp.ge.s32.totalorder %s36, 8
      %s46 = sphi 0, %s48
      %s49 = sphi 0, %s46
      %s50 = sphi 0, %s49
      %s66 = sphi 0, %s50
      %s70 = sphi 0, %s70
      %s72 = sphi 0, %s70
      %s73 = sphi 0, %s72
      %s87 = sphi 0, %s73
      %s91 = sphi 0, %s91
      %s93 = sphi 0, %s91
      %s94 = sphi 0, %s93
      %s108 = sphi 0, %s94
      %s112 = sphi 0, %s112
      %s114 = sphi 0, %s112
      %s115 = sphi 0, %s114
      %s129 = sphi 0, %s115
      %s133 = sphi 0, %s133
      %s135 = sphi 0, %s133
      %s136 = sphi 0, %s135
      %s150 = sphi 0, %s136
      %s154 = sphi 0, %s154
      %s156 = sphi 0, %s154
      %s157 = sphi 0, %s156
      %s171 = sphi 0, %s157
      %s175 = sphi 0, %s175
      %s177 = sphi 0, %s175
      %s178 = sphi 0, %s177
      %s192 = sphi 0, %s178
      %s198 = sphi 0, %s200
      %s201 = sphi 0, %s198
      %s202 = sphi 0, %s201
      %s218 = sphi 0, %s202
    $region4: #{tpu_custom_call.1} parent=1 // loop_header_branch
      %39 = sbr.rel (%p37) target = $region8
    $region5: #{tpu_custom_call.1} parent=1 // loop_body
      %s41 = ssub.s32 %s36, 1
      %s42 = ssub.s32 %s36, 2
      %s43 = sadd.s32 %s36, 1
      %s44 = ssub.s32 %s36, %s43
      %p45 = scmp.eq.s32.totalorder %s44, 0
      %s47 = sadd.s32 %s46, 1
      %s48 = scalar_select %p45, %s46, %s47
      %p51 = pneg %p45
      %p52 = scmp.eq.s32.totalorder %s36, 5
      %p53 = por %p51, %p52
      %p54 = scmp.ne.s32.totalorder %s46, %s49
      %p55 = scmp.eq.s32.totalorder %s36, 0
      %p56 = por %p54, %p55
      %p57 = scmp.ne.s32.totalorder %s46, %s49
      %p58 = scmp.eq.s32.totalorder %s41, 5
      %p59 = por %p57, %p58
      %p60 = scmp.ne.s32.totalorder %s49, %s50
      %p61 = scmp.eq.s32.totalorder %s41, 0
      %p62 = por %p60, %p61
      %p63 = scmp.ne.s32.totalorder %s49, %s50
      %p64 = scmp.eq.s32.totalorder %s42, 5
      %p65 = por %p63, %p64
      %p67 = scmp.ne.s32.totalorder %s50, %s66
      %p68 = scmp.eq.s32.totalorder %s42, 0
      %p69 = por %p67, %p68
      %s71 = sadd.s32 %s70, 1
      %p74 = scmp.eq.s32.totalorder %s36, 5
      %p75 = scmp.ne.s32.totalorder %s70, %s72
      %p76 = scmp.eq.s32.totalorder %s36, 0
      %p77 = por %p75, %p76
      %p78 = scmp.ne.s32.totalorder %s70, %s72
      %p79 = scmp.eq.s32.totalorder %s41, 5
      %p80 = por %p78, %p79
      %p81 = scmp.ne.s32.totalorder %s72, %s73
      %p82 = scmp.eq.s32.totalorder %s41, 0
      %p83 = por %p81, %p82
      %p84 = scmp.ne.s32.totalorder %s72, %s73
      %p85 = scmp.eq.s32.totalorder %s42, 5
      %p86 = por %p84, %p85
      %p88 = scmp.ne.s32.totalorder %s73, %s87
      %p89 = scmp.eq.s32.totalorder %s42, 0
      %p90 = por %p88, %p89
      %s92 = sadd.s32 %s91, 1
      %p95 = scmp.eq.s32.totalorder %s36, 5
      %p96 = scmp.ne.s32.totalorder %s91, %s93
      %p97 = scmp.eq.s32.totalorder %s36, 0
      %p98 = por %p96, %p97
      %p99 = scmp.ne.s32.totalorder %s91, %s93
      %p100 = scmp.eq.s32.totalorder %s41, 5
      %p101 = por %p99, %p100
      %p102 = scmp.ne.s32.totalorder %s93, %s94
      %p103 = scmp.eq.s32.totalorder %s41, 0
      %p104 = por %p102, %p103
      %p105 = scmp.ne.s32.totalorder %s93, %s94
      %p106 = scmp.eq.s32.totalorder %s42, 5
      %p107 = por %p105, %p106
      %p109 = scmp.ne.s32.totalorder %s94, %s108
      %p110 = scmp.eq.s32.totalorder %s42, 0
      %p111 = por %p109, %p110
      %s113 = sadd.s32 %s112, 1
      %p116 = scmp.eq.s32.totalorder %s36, 5
      %p117 = scmp.ne.s32.totalorder %s112, %s114
      %p118 = scmp.eq.s32.totalorder %s36, 0
      %p119 = por %p117, %p118
      %p120 = scmp.ne.s32.totalorder %s112, %s114
      %p121 = scmp.eq.s32.totalorder %s41, 5
      %p122 = por %p120, %p121
      %p123 = scmp.ne.s32.totalorder %s114, %s115
      %p124 = scmp.eq.s32.totalorder %s41, 0
      %p125 = por %p123, %p124
      %p126 = scmp.ne.s32.totalorder %s114, %s115
      %p127 = scmp.eq.s32.totalorder %s42, 5
      %p128 = por %p126, %p127
      %p130 = scmp.ne.s32.totalorder %s115, %s129
      %p131 = scmp.eq.s32.totalorder %s42, 0
      %p132 = por %p130, %p131
      %s134 = sadd.s32 %s133, 1
      %p137 = scmp.eq.s32.totalorder %s36, 5
      %p138 = scmp.ne.s32.totalorder %s133, %s135
      %p139 = scmp.eq.s32.totalorder %s36, 0
      %p140 = por %p138, %p139
      %p141 = scmp.ne.s32.totalorder %s133, %s135
      %p142 = scmp.eq.s32.totalorder %s41, 5
      %p143 = por %p141, %p142
      %p144 = scmp.ne.s32.totalorder %s135, %s136
      %p145 = scmp.eq.s32.totalorder %s41, 0
      %p146 = por %p144, %p145
      %p147 = scmp.ne.s32.totalorder %s135, %s136
      %p148 = scmp.eq.s32.totalorder %s42, 5
      %p149 = por %p147, %p148
      %p151 = scmp.ne.s32.totalorder %s136, %s150
      %p152 = scmp.eq.s32.totalorder %s42, 0
      %p153 = por %p151, %p152
      %s155 = sadd.s32 %s154, 1
      %p158 = scmp.eq.s32.totalorder %s36, 5
      %p159 = scmp.ne.s32.totalorder %s154, %s156
      %p160 = scmp.eq.s32.totalorder %s36, 0
      %p161 = por %p159, %p160
      %p162 = scmp.ne.s32.totalorder %s154, %s156
      %p163 = scmp.eq.s32.totalorder %s41, 5
      %p164 = por %p162, %p163
      %p165 = scmp.ne.s32.totalorder %s156, %s157
      %p166 = scmp.eq.s32.totalorder %s41, 0
      %p167 = por %p165, %p166
      %p168 = scmp.ne.s32.totalorder %s156, %s157
      %p169 = scmp.eq.s32.totalorder %s42, 5
      %p170 = por %p168, %p169
      %p172 = scmp.ne.s32.totalorder %s157, %s171
      %p173 = scmp.eq.s32.totalorder %s42, 0
      %p174 = por %p172, %p173
      %s176 = sadd.s32 %s175, 1
      %p179 = scmp.eq.s32.totalorder %s36, 5
      %p180 = scmp.ne.s32.totalorder %s175, %s177
      %p181 = scmp.eq.s32.totalorder %s36, 0
      %p182 = por %p180, %p181
      %p183 = scmp.ne.s32.totalorder %s175, %s177
      %p184 = scmp.eq.s32.totalorder %s41, 5
      %p185 = por %p183, %p184
      %p186 = scmp.ne.s32.totalorder %s177, %s178
      %p187 = scmp.eq.s32.totalorder %s41, 0
      %p188 = por %p186, %p187
      %p189 = scmp.ne.s32.totalorder %s177, %s178
      %p190 = scmp.eq.s32.totalorder %s42, 5
      %p191 = por %p189, %p190
      %p193 = scmp.ne.s32.totalorder %s178, %s192
      %p194 = scmp.eq.s32.totalorder %s42, 0
      %p195 = por %p193, %p194
      %s196 = ssub.s32 %s36, %s43
      %p197 = scmp.eq.s32.totalorder %s196, 0
      %s199 = sadd.s32 %s198, 1
      %s200 = scalar_select %p197, %s198, %s199
      %p203 = pneg %p197
      %p204 = scmp.eq.s32.totalorder %s36, 5
      %p205 = por %p203, %p204
      %p206 = scmp.ne.s32.totalorder %s198, %s201
      %p207 = scmp.eq.s32.totalorder %s36, 0
      %p208 = por %p206, %p207
      %p209 = scmp.ne.s32.totalorder %s198, %s201
      %p210 = scmp.eq.s32.totalorder %s41, 5
      %p211 = por %p209, %p210
      %p212 = scmp.ne.s32.totalorder %s201, %s202
      %p213 = scmp.eq.s32.totalorder %s41, 0
      %p214 = por %p212, %p213
      %p215 = scmp.ne.s32.totalorder %s201, %s202
      %p216 = scmp.eq.s32.totalorder %s42, 5
      %p217 = por %p215, %p216
      %p219 = scmp.ne.s32.totalorder %s202, %s218
      %p220 = scmp.eq.s32.totalorder %s42, 0
      %p221 = por %p219, %p220
      %p222 = scmp.le.s32.totalorder 1, %s36
      %p223 = scmp.lt.s32.totalorder %s36, 7
      %p224 = pnand %p222, %p223
      %p225 = pneg %p224
      // Predicated region
      $region9: #{tpu_custom_call.1} parent=5 // pred_check
        _
      $region10: #{tpu_custom_call.1} parent=5 // pred_check_branch
        %227 = sbr.rel (%p224) target = $region12
      $region11: #{tpu_custom_call.1} parent=5 // pred_region
        %s228 = ssub.s32 %s36, 1
        // Predicated region
        $region13: #{tpu_custom_call.1} parent=11 // pred_check
          %p229 = pneg %p83
        $region14: #{tpu_custom_call.1} parent=11 // pred_check_branch
          %231 = sbr.rel (%p229) target = $region16
        $region15: #{tpu_custom_call.1} parent=11 // pred_region
          %233 = vsyncadd [#allocation9], 0
          %s234 = sshll.u32 %s3, 4
          %s235 = int_to_ptr.hbm [resolvable:$true] %s234
          %s236 = sshll.u32 [#allocation8], 4
          %s237 = int_to_ptr.vmem [resolvable:$true] %s236
          %242 = dma.hbm_to_vmem [thread:$0]  %s235, 1536, %s237, [#allocation9], 128, 128, 8
        $region16: #{tpu_custom_call.1} parent=11 // pred_fallthru
          _
        // Predicated region
        $region17: #{tpu_custom_call.1} parent=11 // pred_check
          %p243 = pneg %p104
        $region18: #{tpu_custom_call.1} parent=11 // pred_check_branch
          %245 = sbr.rel (%p243) target = $region20
        $region19: #{tpu_custom_call.1} parent=11 // pred_region
          _
        $region20: #{tpu_custom_call.1} parent=11 // pred_fallthru
          _
        // Predicated region
        $region21: #{tpu_custom_call.1} parent=11 // pred_check
          %p246 = pneg %p125
        $region22: #{tpu_custom_call.1} parent=11 // pred_check_branch
          %248 = sbr.rel (%p246) target = $region24
        $region23: #{tpu_custom_call.1} parent=11 // pred_region
          %250 = vsyncadd [#allocation9], 0
          %s251 = sshll.u32 %s5, 4
          %s252 = int_to_ptr.hbm [resolvable:$true] %s251
          %s253 = sshll.u32 [#allocation10], 4
          %s254 = int_to_ptr.vmem [resolvable:$true] %s253
          %259 = dma.hbm_to_vmem [thread:$0]  %s252, 1536, %s254, [#allocation9], 128, 128, 8
        $region24: #{tpu_custom_call.1} parent=11 // pred_fallthru
          _
        // Predicated region
        $region25: #{tpu_custom_call.1} parent=11 // pred_check
          %p260 = pneg %p146
        $region26: #{tpu_custom_call.1} parent=11 // pred_check_branch
          %262 = sbr.rel (%p260) target = $region28
        $region27: #{tpu_custom_call.1} parent=11 // pred_region
          _
        $region28: #{tpu_custom_call.1} parent=11 // pred_fallthru
          _
        // Predicated region
        $region29: #{tpu_custom_call.1} parent=11 // pred_check
          %p263 = pneg %p167
        $region30: #{tpu_custom_call.1} parent=11 // pred_check_branch
          %265 = sbr.rel (%p263) target = $region32
        $region31: #{tpu_custom_call.1} parent=11 // pred_region
          %267 = vsyncadd [#allocation12], 0
          %s268 = sshll.u32 %s7, 4
          %s269 = int_to_ptr.hbm [resolvable:$true] %s268
          %s270 = sshll.u32 [#allocation11], 4
          %s271 = int_to_ptr.vmem [resolvable:$true] %s270
          %276 = dma.hbm_to_vmem [thread:$0]  %s269, 1536, %s271, [#allocation12], 128, 128, 8
        $region32: #{tpu_custom_call.1} parent=11 // pred_fallthru
          _
        // Predicated region
        $region33: #{tpu_custom_call.1} parent=11 // pred_check
          %p277 = pneg %p188
        $region34: #{tpu_custom_call.1} parent=11 // pred_check_branch
          %279 = sbr.rel (%p277) target = $region36
        $region35: #{tpu_custom_call.1} parent=11 // pred_region
          _
        $region36: #{tpu_custom_call.1} parent=11 // pred_fallthru
          _
      $region12: #{tpu_custom_call.1} parent=5 // pred_fallthru
        _
      %p280 = scmp.lt.s32.totalorder %s36, 6
      // Predicated region
      $region37: #{tpu_custom_call.1} parent=5 // pred_check
        %p281 = pneg %p280
      $region38: #{tpu_custom_call.1} parent=5 // pred_check_branch
        %283 = sbr.rel (%p281) target = $region40
      $region39: #{tpu_custom_call.1} parent=5 // pred_region
        // Predicated region
        $region41: #{tpu_custom_call.1} parent=39 // pred_check
          %p284 = pneg %p56
        $region42: #{tpu_custom_call.1} parent=39 // pred_check_branch
          %286 = sbr.rel (%p284) target = $region44
        $region43: #{tpu_custom_call.1} parent=39 // pred_region
          %s287 = sand.u32 %s46, 1
          %s288 = scalar_lea.sflag [#allocation6], %s287
          %s289 = sand.u32 %s46, 1
          %s290 = smul.addr %s289, 24
          %s291 = scalar_lea.vmem [#allocation5], %s290
          %293 = vsyncadd %s288, 0
          %s294 = smul.addr %s36, 3
          %s295 = smul.addr %s294, 8
          %s296 = scalar_lea.hbm %s2, %s295
          %s297 = sshll.u32 %s296, 4
          %s298 = int_to_ptr.hbm [resolvable:$true] %s297
          %s299 = sshll.u32 %s291, 4
          %s300 = int_to_ptr.vmem [resolvable:$true] %s299
          %305 = dma.hbm_to_vmem [thread:$0]  %s298, 384, %s300, %s288, 128, 128, 8
        $region44: #{tpu_custom_call.1} parent=39 // pred_fallthru
          _
      $region40: #{tpu_custom_call.1} parent=5 // pred_fallthru
        _
      %p306 = scmp.le.s32.totalorder 1, %s36
      %p307 = scmp.lt.s32.totalorder %s36, 7
      %p308 = pnand %p306, %p307
      %p309 = pneg %p308
      // Predicated region
      $region45: #{tpu_custom_call.1} parent=5 // pred_check
        _
      $region46: #{tpu_custom_call.1} parent=5 // pred_check_branch
        %311 = sbr.rel (%p308) target = $region48
      $region47: #{tpu_custom_call.1} parent=5 // pred_region
        %s312 = ssub.s32 %s36, 1
        %s313 = sand.u32 %s49, 1
        %s314 = scalar_lea.sflag [#allocation6], %s313
        %s315 = sand.u32 %s49, 1
        %s316 = smul.addr %s315, 24
        %s317 = scalar_lea.vmem [#allocation5], %s316
        // Predicated region
        $region49: #{tpu_custom_call.1} parent=47 // pred_check
          %p318 = pneg %p62
        $region50: #{tpu_custom_call.1} parent=47 // pred_check_branch
          %320 = sbr.rel (%p318) target = $region52
        $region51: #{tpu_custom_call.1} parent=47 // pred_region
          %322 = dma.done %s314, 384
        $region52: #{tpu_custom_call.1} parent=47 // pred_fallthru
          _
        // Predicated region
        $region53: #{tpu_custom_call.1} parent=47 // pred_check
          %p323 = pneg %p83
        $region54: #{tpu_custom_call.1} parent=47 // pred_check_branch
          %325 = sbr.rel (%p323) target = $region56
        $region55: #{tpu_custom_call.1} parent=47 // pred_region
          %327 = dma.done [#allocation9], 1536
        $region56: #{tpu_custom_call.1} parent=47 // pred_fallthru
          _
        // Predicated region
        $region57: #{tpu_custom_call.1} parent=47 // pred_check
          %p328 = pneg %p125
        $region58: #{tpu_custom_call.1} parent=47 // pred_check_branch
          %330 = sbr.rel (%p328) target = $region60
        $region59: #{tpu_custom_call.1} parent=47 // pred_region
          %332 = dma.done [#allocation9], 1536
        $region60: #{tpu_custom_call.1} parent=47 // pred_fallthru
          _
        // Predicated region
        $region61: #{tpu_custom_call.1} parent=47 // pred_check
          %p333 = pneg %p167
        $region62: #{tpu_custom_call.1} parent=47 // pred_check_branch
          %335 = sbr.rel (%p333) target = $region64
        $region63: #{tpu_custom_call.1} parent=47 // pred_region
          %337 = dma.done [#allocation12], 1536
        $region64: #{tpu_custom_call.1} parent=47 // pred_fallthru
          _
        %s338 = sand.u32 %s49, 1
        %s339 = scalar_lea.sflag [#allocation6], %s338
        %s340 = sand.u32 %s49, 1
        %s341 = smul.addr %s340, 24
        %s342 = scalar_lea.vmem [#allocation5], %s341
        %p343 = pneg %p62
        %p344 = pneg %p59
        %p345 = pneg %p83
        %p346 = pneg %p80
        %p347 = pneg %p104
        %p348 = pneg %p101
        %p349 = pneg %p125
        %p350 = pneg %p122
        %p351 = pneg %p146
        %p352 = pneg %p143
        %p353 = pneg %p167
        %p354 = pneg %p164
        %p355 = pneg %p188
        %p356 = pneg %p185
        %p357 = pneg %p214
        %p358 = pneg %p211
        %s359 = sand.u32 %s201, 1
        %s360 = scalar_lea.sflag [#allocation7], %s359
        %s361 = sand.u32 %s201, 1
        %s362 = smul.addr %s361, 8
        %s363 = scalar_lea.vmem [#allocation13], %s362
        %s364 = sld [smem:[#allocation3 + %s41]]
        %s365 = sld [smem:[#allocation4 + %s41]]
        %v366 = vlaneseq
        %v367 = vshrl.u32 %v366, 7
        %v368 = vadd.s32 %v367, 8
        %v369 = vadd.s32 %v367, 16
        %s370 = ssub.s32 %s364, 8
        %v371 = vstv %s370
        %v372 = vadd.s32 %v367, %v371
        %v373 = vadd.s32 %v368, %v371
        %v374 = vadd.s32 %v369, %v371
        %vm375 = vcmp.ge.s32.totalorder %v372, 0
        %vm376 = vcmp.ge.s32.totalorder %v373, 0
        %vm377 = vcmp.ge.s32.totalorder %v374, 0
        %v378 = vstv %s365
        %vm379 = vcmp.lt.s32.totalorder %v372, %v378
        %vm380 = vcmp.lt.s32.totalorder %v373, %v378
        %vm381 = vcmp.lt.s32.totalorder %v374, %v378
        %vm382 = vmand %vm375, %vm379
        %vm383 = vmand %vm376, %vm380
        %vm384 = vmand %vm377, %vm381
        %v385 = vld [vmem:[%s317] sm:$0xff]
        %v386 = vld [vmem:[%s317 + $0x8] sm:$0xff]
        %v387 = vld [vmem:[%s317 + $0x10] sm:$0xff]
        %v388 = vsel %vm382, 1, 0
        %v389 = vsel %vm383, 1, 0
        %v390 = vsel %vm384, 1, 0
        %vm391 = vcmp.eq.s32.totalorder %v388, 1
        %vm392 = vcmp.eq.s32.totalorder %v389, 1
        %vm393 = vcmp.eq.s32.totalorder %v390, 1
        %v394 = vsel %vm391, %v385, 0.0
        %v395 = vsel %vm392, %v386, 0.0
        %v396 = vsel %vm393, %v387, 0.0
        %s397 = scalar_lea.vmem [#allocation8], 32
        %v398 = vld [vmem:[%s397] sm:$0xff]
        %v399 = vld [vmem:[%s397 + $0x8] sm:$0xff]
        %v400 = vld [vmem:[%s397 + $0x10] sm:$0xff]
        %v401 = vld [vmem:[%s397 + $0x18] sm:$0xff]
        %v402 = vld [vmem:[#allocation8] sm:$0xff]
        %v403 = vld [vmem:[#allocation8 + $0x8] sm:$0xff]
        %v404 = vld [vmem:[#allocation8 + $0x10] sm:$0xff]
        %v405 = vld [vmem:[#allocation8 + $0x18] sm:$0xff]
        %vm406 = vcmask 261120
        %v408 = vsel %vm406, %v394, 0
        %v411 = vsel %vm406, %v395, 0
        %v414 = vsel %vm406, %v396, 0
        %416 = vmatpush.msra.mxu0 0.0
        %417 = vmatpush.msra.mxu0 0.0
        %418 = vmatpush.msra.mxu0 0.0
        %419 = vmatpush.msra.mxu0 0.0
        %420 = vmatpush.msra.mxu0 0.0
        %421 = vmatpush.msra.mxu0 0.0
        %422 = vmatpush.msra.mxu0 0.0
        %423 = vmatpush.msra.mxu0 0.0
        %424 = vmatpush.msra.mxu0 0.0
        %425 = vmatpush.msra.mxu0 0.0
        %426 = vmatpush.msra.mxu0 0.0
        %427 = vmatpush.msra.mxu0 0.0
        %428 = vmatpush.msra.mxu0 %v405
        %429 = vmatpush.msra.mxu0 %v404
        %430 = vmatpush.msra.mxu0 %v403
        %431 = vmatpush.msra.mxu0 %v402
        %432 = vmatmul.f32.gmra.mxu0 %v408
        %v433 = vpop.f32.mrf.mxu0
        %v434 = vadd.f32 0.0, %v433
        %435 = vmatmul.f32.gmra.mxu0 %v411
        %v436 = vpop.f32.mrf.mxu0
        %v437 = vadd.f32 0.0, %v436
        %438 = vmatmul.f32.gmra.mxu0 %v414
        %v439 = vpop.f32.mrf.mxu0
        %v440 = vadd.f32 0.0, %v439
        %441 = vdwg.mxu0
        %v442 = vrot.slane %v434, 7
        %v443 = vrot.slane %v437, 7
        %v444 = vrot.slane %v440, 7
        %vm445 = vcmp.lt.s32.totalorder %v367, 1
        %v446 = vsel %vm445, %v443, %v444
        %v447 = vsel %vm445, %v442, %v443
        %v448 = vsel %vm445, %v444, %v442
        %449 = vmatpush.msra.mxu0 0.0
        %450 = vmatpush.msra.mxu0 0.0
        %451 = vmatpush.msra.mxu0 0.0
        %452 = vmatpush.msra.mxu0 0.0
        %453 = vmatpush.msra.mxu0 0.0
        %454 = vmatpush.msra.mxu0 0.0
        %455 = vmatpush.msra.mxu0 0.0
        %456 = vmatpush.msra.mxu0 0.0
        %457 = vmatpush.msra.mxu0 0.0
        %458 = vmatpush.msra.mxu0 0.0
        %459 = vmatpush.msra.mxu0 0.0
        %460 = vmatpush.msra.mxu0 0.0
        %461 = vmatpush.msra.mxu0 %v401
        %462 = vmatpush.msra.mxu0 %v400
        %463 = vmatpush.msra.mxu0 %v399
        %464 = vmatpush.msra.mxu0 %v398
        %465 = vmatmul.f32.gmra.mxu0 %v408
        %v466 = vpop.f32.mrf.mxu0
        %v467 = vadd.f32 %v448, %v466
        %468 = vmatmul.f32.gmra.mxu0 %v411
        %v469 = vpop.f32.mrf.mxu0
        %v470 = vadd.f32 %v447, %v469
        %471 = vmatmul.f32.gmra.mxu0 %v414
        %v472 = vpop.f32.mrf.mxu0
        %v473 = vadd.f32 %v446, %v472
        %474 = vdwg.mxu0
        %s475 = scalar_lea.vmem [#allocation8], 64
        %v476 = vld [vmem:[%s475] sm:$0xff]
        %v477 = vld [vmem:[%s475 + $0x8] sm:$0xff]
        %v478 = vld [vmem:[%s475 + $0x10] sm:$0xff]
        %v479 = vld [vmem:[%s475 + $0x18] sm:$0xff]
        %480 = vmatpush.msra.mxu0 0.0
        %481 = vmatpush.msra.mxu0 0.0
        %482 = vmatpush.msra.mxu0 0.0
        %483 = vmatpush.msra.mxu0 0.0
        %484 = vmatpush.msra.mxu0 0.0
        %485 = vmatpush.msra.mxu0 0.0
        %486 = vmatpush.msra.mxu0 0.0
        %487 = vmatpush.msra.mxu0 0.0
        %488 = vmatpush.msra.mxu0 0.0
        %489 = vmatpush.msra.mxu0 0.0
        %490 = vmatpush.msra.mxu0 0.0
        %491 = vmatpush.msra.mxu0 0.0
        %492 = vmatpush.msra.mxu0 %v479
        %493 = vmatpush.msra.mxu0 %v478
        %494 = vmatpush.msra.mxu0 %v477
        %495 = vmatpush.msra.mxu0 %v476
        %496 = vmatmul.f32.gmra.mxu0 %v408
        %v497 = vpop.f32.mrf.mxu0
        %v498 = vadd.f32 0.0, %v497
        %499 = vmatmul.f32.gmra.mxu0 %v411
        %v500 = vpop.f32.mrf.mxu0
        %v501 = vadd.f32 0.0, %v500
        %502 = vmatmul.f32.gmra.mxu0 %v414
        %v503 = vpop.f32.mrf.mxu0
        %v504 = vadd.f32 0.0, %v503
        %505 = vdwg.mxu0
        %v506 = vrot.slane %v498, 1
        %v507 = vrot.slane %v501, 1
        %v508 = vrot.slane %v504, 1
        %vm509 = vcmp.lt.s32.totalorder %v367, 7
        %v510 = vsel %vm509, %v507, %v508
        %v511 = vsel %vm509, %v506, %v507
        %v512 = vsel %vm509, %v508, %v506
        %v513 = vadd.f32 %v467, %v511
        %v514 = vadd.f32 %v470, %v510
        %v515 = vadd.f32 %v473, %v512
        %v516 = vld [vmem:[%s4] sm:$0x1]
        %v518 = vperm.slane %v516, 0
        %v520 = vadd.f32 %v513, %v518
        %v521 = vadd.f32 %v514, %v518
        %v522 = vadd.f32 %v515, %v518
        %v523 = vsel %vm391, %v520, 0.0
        %v524 = vsel %vm392, %v521, 0.0
        %v525 = vsel %vm393, %v522, 0.0
        %v526 = vmax.f32 %v523, 0.0
        %v527 = vmax.f32 %v524, 0.0
        %v528 = vmax.f32 %v525, 0.0
        %s529 = scalar_lea.vmem [#allocation10], 32
        %v530 = vld [vmem:[%s529] sm:$0xff]
        %v531 = vld [vmem:[%s529 + $0x8] sm:$0xff]
        %v532 = vld [vmem:[%s529 + $0x10] sm:$0xff]
        %v533 = vld [vmem:[%s529 + $0x18] sm:$0xff]
        %v534 = vld [vmem:[#allocation10] sm:$0xff]
        %v535 = vld [vmem:[#allocation10 + $0x8] sm:$0xff]
        %v536 = vld [vmem:[#allocation10 + $0x10] sm:$0xff]
        %v537 = vld [vmem:[#allocation10 + $0x18] sm:$0xff]
        %v539 = vsel %vm406, %v526, 0
        %v542 = vsel %vm406, %v527, 0
        %v545 = vsel %vm406, %v528, 0
        %547 = vmatpush.msra.mxu0 0.0
        %548 = vmatpush.msra.mxu0 0.0
        %549 = vmatpush.msra.mxu0 0.0
        %550 = vmatpush.msra.mxu0 0.0
        %551 = vmatpush.msra.mxu0 0.0
        %552 = vmatpush.msra.mxu0 0.0
        %553 = vmatpush.msra.mxu0 0.0
        %554 = vmatpush.msra.mxu0 0.0
        %555 = vmatpush.msra.mxu0 0.0
        %556 = vmatpush.msra.mxu0 0.0
        %557 = vmatpush.msra.mxu0 0.0
        %558 = vmatpush.msra.mxu0 0.0
        %559 = vmatpush.msra.mxu0 %v537
        %560 = vmatpush.msra.mxu0 %v536
        %561 = vmatpush.msra.mxu0 %v535
        %562 = vmatpush.msra.mxu0 %v534
        %563 = vmatmul.f32.gmra.mxu0 %v539
        %v564 = vpop.f32.mrf.mxu0
        %v565 = vadd.f32 0.0, %v564
        %566 = vmatmul.f32.gmra.mxu0 %v542
        %v567 = vpop.f32.mrf.mxu0
        %v568 = vadd.f32 0.0, %v567
        %569 = vmatmul.f32.gmra.mxu0 %v545
        %v570 = vpop.f32.mrf.mxu0
        %v571 = vadd.f32 0.0, %v570
        %572 = vdwg.mxu0
        %v573 = vrot.slane %v565, 7
        %v574 = vrot.slane %v568, 7
        %v575 = vrot.slane %v571, 7
        %v576 = vsel %vm445, %v574, %v575
        %v577 = vsel %vm445, %v573, %v574
        %v578 = vsel %vm445, %v575, %v573
        %579 = vmatpush.msra.mxu0 0.0
        %580 = vmatpush.msra.mxu0 0.0
        %581 = vmatpush.msra.mxu0 0.0
        %582 = vmatpush.msra.mxu0 0.0
        %583 = vmatpush.msra.mxu0 0.0
        %584 = vmatpush.msra.mxu0 0.0
        %585 = vmatpush.msra.mxu0 0.0
        %586 = vmatpush.msra.mxu0 0.0
        %587 = vmatpush.msra.mxu0 0.0
        %588 = vmatpush.msra.mxu0 0.0
        %589 = vmatpush.msra.mxu0 0.0
        %590 = vmatpush.msra.mxu0 0.0
        %591 = vmatpush.msra.mxu0 %v533
        %592 = vmatpush.msra.mxu0 %v532
        %593 = vmatpush.msra.mxu0 %v531
        %594 = vmatpush.msra.mxu0 %v530
        %595 = vmatmul.f32.gmra.mxu0 %v539
        %v596 = vpop.f32.mrf.mxu0
        %v597 = vadd.f32 %v578, %v596
        %598 = vmatmul.f32.gmra.mxu0 %v542
        %v599 = vpop.f32.mrf.mxu0
        %v600 = vadd.f32 %v577, %v599
        %601 = vmatmul.f32.gmra.mxu0 %v545
        %v602 = vpop.f32.mrf.mxu0
        %v603 = vadd.f32 %v576, %v602
        %604 = vdwg.mxu0
        %s605 = scalar_lea.vmem [#allocation10], 64
        %v606 = vld [vmem:[%s605] sm:$0xff]
        %v607 = vld [vmem:[%s605 + $0x8] sm:$0xff]
        %v608 = vld [vmem:[%s605 + $0x10] sm:$0xff]
        %v609 = vld [vmem:[%s605 + $0x18] sm:$0xff]
        %610 = vmatpush.msra.mxu0 0.0
        %611 = vmatpush.msra.mxu0 0.0
        %612 = vmatpush.msra.mxu0 0.0
        %613 = vmatpush.msra.mxu0 0.0
        %614 = vmatpush.msra.mxu0 0.0
        %615 = vmatpush.msra.mxu0 0.0
        %616 = vmatpush.msra.mxu0 0.0
        %617 = vmatpush.msra.mxu0 0.0
        %618 = vmatpush.msra.mxu0 0.0
        %619 = vmatpush.msra.mxu0 0.0
        %620 = vmatpush.msra.mxu0 0.0
        %621 = vmatpush.msra.mxu0 0.0
        %622 = vmatpush.msra.mxu0 %v609
        %623 = vmatpush.msra.mxu0 %v608
        %624 = vmatpush.msra.mxu0 %v607
        %625 = vmatpush.msra.mxu0 %v606
        %626 = vmatmul.f32.gmra.mxu0 %v539
        %v627 = vpop.f32.mrf.mxu0
        %v628 = vadd.f32 0.0, %v627
        %629 = vmatmul.f32.gmra.mxu0 %v542
        %v630 = vpop.f32.mrf.mxu0
        %v631 = vadd.f32 0.0, %v630
        %632 = vmatmul.f32.gmra.mxu0 %v545
        %v633 = vpop.f32.mrf.mxu0
        %v634 = vadd.f32 0.0, %v633
        %635 = vdwg.mxu0
        %v636 = vrot.slane %v628, 1
        %v637 = vrot.slane %v631, 1
        %v638 = vrot.slane %v634, 1
        %v639 = vsel %vm509, %v637, %v638
        %v640 = vsel %vm509, %v636, %v637
        %v641 = vsel %vm509, %v638, %v636
        %v642 = vadd.f32 %v597, %v640
        %v643 = vadd.f32 %v600, %v639
        %v644 = vadd.f32 %v603, %v641
        %v645 = vld [vmem:[%s6] sm:$0x1]
        %v647 = vperm.slane %v645, 0
        %v649 = vadd.f32 %v642, %v647
        %v650 = vadd.f32 %v643, %v647
        %v651 = vadd.f32 %v644, %v647
        %v652 = vsel %vm391, %v649, 0.0
        %v653 = vsel %vm392, %v650, 0.0
        %v654 = vsel %vm393, %v651, 0.0
        %v655 = vmax.f32 %v652, 0.0
        %v656 = vmax.f32 %v653, 0.0
        %v657 = vmax.f32 %v654, 0.0
        %s658 = scalar_lea.vmem [#allocation11], 32
        %v659 = vld [vmem:[%s658] sm:$0xff]
        %v660 = vld [vmem:[%s658 + $0x8] sm:$0xff]
        %v661 = vld [vmem:[%s658 + $0x10] sm:$0xff]
        %v662 = vld [vmem:[%s658 + $0x18] sm:$0xff]
        %v663 = vld [vmem:[#allocation11] sm:$0xff]
        %v664 = vld [vmem:[#allocation11 + $0x8] sm:$0xff]
        %v665 = vld [vmem:[#allocation11 + $0x10] sm:$0xff]
        %v666 = vld [vmem:[#allocation11 + $0x18] sm:$0xff]
        %v668 = vsel %vm406, %v655, 0
        %v671 = vsel %vm406, %v656, 0
        %v674 = vsel %vm406, %v657, 0
        %676 = vmatpush.msra.mxu0 0.0
        %677 = vmatpush.msra.mxu0 0.0
        %678 = vmatpush.msra.mxu0 0.0
        %679 = vmatpush.msra.mxu0 0.0
        %680 = vmatpush.msra.mxu0 0.0
        %681 = vmatpush.msra.mxu0 0.0
        %682 = vmatpush.msra.mxu0 0.0
        %683 = vmatpush.msra.mxu0 0.0
        %684 = vmatpush.msra.mxu0 0.0
        %685 = vmatpush.msra.mxu0 0.0
        %686 = vmatpush.msra.mxu0 0.0
        %687 = vmatpush.msra.mxu0 0.0
        %688 = vmatpush.msra.mxu0 %v666
        %689 = vmatpush.msra.mxu0 %v665
        %690 = vmatpush.msra.mxu0 %v664
        %691 = vmatpush.msra.mxu0 %v663
        %692 = vmatmul.f32.gmra.mxu0 %v668
        %v693 = vpop.f32.mrf.mxu0
        %v694 = vadd.f32 0.0, %v693
        %695 = vmatmul.f32.gmra.mxu0 %v671
        %v696 = vpop.f32.mrf.mxu0
        %v697 = vadd.f32 0.0, %v696
        %698 = vmatmul.f32.gmra.mxu0 %v674
        %v699 = vpop.f32.mrf.mxu0
        %700 = vdwg.mxu0
        %v701 = vrot.slane %v694, 7
        %v702 = vrot.slane %v697, 7
        %v703 = vsel %vm445, %v701, %v702
        %704 = vmatpush.msra.mxu0 0.0
        %705 = vmatpush.msra.mxu0 0.0
        %706 = vmatpush.msra.mxu0 0.0
        %707 = vmatpush.msra.mxu0 0.0
        %708 = vmatpush.msra.mxu0 0.0
        %709 = vmatpush.msra.mxu0 0.0
        %710 = vmatpush.msra.mxu0 0.0
        %711 = vmatpush.msra.mxu0 0.0
        %712 = vmatpush.msra.mxu0 0.0
        %713 = vmatpush.msra.mxu0 0.0
        %714 = vmatpush.msra.mxu0 0.0
        %715 = vmatpush.msra.mxu0 0.0
        %716 = vmatpush.msra.mxu0 %v662
        %717 = vmatpush.msra.mxu0 %v661
        %718 = vmatpush.msra.mxu0 %v660
        %719 = vmatpush.msra.mxu0 %v659
        %720 = vmatmul.f32.gmra.mxu0 %v668
        %v721 = vpop.f32.mrf.mxu0
        %722 = vmatmul.f32.gmra.mxu0 %v671
        %v723 = vpop.f32.mrf.mxu0
        %v724 = vadd.f32 %v703, %v723
        %725 = vmatmul.f32.gmra.mxu0 %v674
        %v726 = vpop.f32.mrf.mxu0
        %727 = vdwg.mxu0
        %s728 = scalar_lea.vmem [#allocation11], 64
        %v729 = vld [vmem:[%s728] sm:$0xff]
        %v730 = vld [vmem:[%s728 + $0x8] sm:$0xff]
        %v731 = vld [vmem:[%s728 + $0x10] sm:$0xff]
        %v732 = vld [vmem:[%s728 + $0x18] sm:$0xff]
        %733 = vmatpush.msra.mxu0 0.0
        %734 = vmatpush.msra.mxu0 0.0
        %735 = vmatpush.msra.mxu0 0.0
        %736 = vmatpush.msra.mxu0 0.0
        %737 = vmatpush.msra.mxu0 0.0
        %738 = vmatpush.msra.mxu0 0.0
        %739 = vmatpush.msra.mxu0 0.0
        %740 = vmatpush.msra.mxu0 0.0
        %741 = vmatpush.msra.mxu0 0.0
        %742 = vmatpush.msra.mxu0 0.0
        %743 = vmatpush.msra.mxu0 0.0
        %744 = vmatpush.msra.mxu0 0.0
        %745 = vmatpush.msra.mxu0 %v732
        %746 = vmatpush.msra.mxu0 %v731
        %747 = vmatpush.msra.mxu0 %v730
        %748 = vmatpush.msra.mxu0 %v729
        %749 = vmatmul.f32.gmra.mxu0 %v668
        %v750 = vpop.f32.mrf.mxu0
        %751 = vmatmul.f32.gmra.mxu0 %v671
        %v752 = vpop.f32.mrf.mxu0
        %v753 = vadd.f32 0.0, %v752
        %754 = vmatmul.f32.gmra.mxu0 %v674
        %v755 = vpop.f32.mrf.mxu0
        %v756 = vadd.f32 0.0, %v755
        %757 = vdwg.mxu0
        %v758 = vrot.slane %v753, 1
        %v759 = vrot.slane %v756, 1
        %v760 = vsel %vm509, %v758, %v759
        %v761 = vadd.f32 %v724, %v760
        %v762 = vld [vmem:[%s8] sm:$0x1]
        %v764 = vperm.slane %v762, 0
        %v766 = vadd.f32 %v761, %v764
        %v767 = vsel %vm392, %v766, 0.0
        %768 = vst [vmem:[%s363] sm:$0xff] %v767
        %s769 = sand.u32 %s201, 1
        %s770 = scalar_lea.sflag [#allocation7], %s769
        %s771 = sand.u32 %s201, 1
        %s772 = smul.addr %s771, 8
        %s773 = scalar_lea.vmem [#allocation13], %s772
        // Predicated region
        $region65: #{tpu_custom_call.1} parent=47 // pred_check
          %p774 = pneg %p211
        $region66: #{tpu_custom_call.1} parent=47 // pred_check_branch
          %776 = sbr.rel (%p774) target = $region68
        $region67: #{tpu_custom_call.1} parent=47 // pred_region
          %778 = vsyncadd %s770, 0
          %s779 = smul.addr %s41, 8
          %s780 = scalar_lea.hbm %s9, %s779
          %s782 = sshll.u32 %s773, 4
          %s783 = int_to_ptr.vmem [resolvable:$true] %s782
          %s784 = sshll.u32 %s780, 4
          %s785 = int_to_ptr.hbm [resolvable:$true] %s784
          %787 = dma.vmem_to_hbm [thread:$0]  %s783, 128, %s785, %s770
        $region68: #{tpu_custom_call.1} parent=47 // pred_fallthru
          _
      $region48: #{tpu_custom_call.1} parent=5 // pred_fallthru
        _
      %p788 = scmp.le.s32.totalorder 2, %s36
      // Predicated region
      $region69: #{tpu_custom_call.1} parent=5 // pred_check
        %p789 = pneg %p788
      $region70: #{tpu_custom_call.1} parent=5 // pred_check_branch
        %791 = sbr.rel (%p789) target = $region72
      $region71: #{tpu_custom_call.1} parent=5 // pred_region
        %s792 = ssub.s32 %s36, 2
        // Predicated region
        $region73: #{tpu_custom_call.1} parent=71 // pred_check
          %p793 = pneg %p217
        $region74: #{tpu_custom_call.1} parent=71 // pred_check_branch
          %795 = sbr.rel (%p793) target = $region76
        $region75: #{tpu_custom_call.1} parent=71 // pred_region
          %s796 = sand.u32 %s202, 1
          %s797 = scalar_lea.sflag [#allocation7], %s796
          %s798 = sand.u32 %s202, 1
          %s799 = smul.addr %s798, 8
          %s800 = scalar_lea.vmem [#allocation13], %s799
          %802 = dma.done %s797, 128
        $region76: #{tpu_custom_call.1} parent=71 // pred_fallthru
          _
      $region72: #{tpu_custom_call.1} parent=5 // pred_fallthru
        _
    $region6: #{tpu_custom_call.1} parent=1 // loop_footer
      %s40 = sadd.s32 1, %s36
    $region7: #{tpu_custom_call.1} parent=1 // loop_footer_branch
      %35 = sbr.rel target = $region3
    $region8: #{tpu_custom_call.1} parent=1 // loop_exit
      _
    %803 = vsyncpa [#allocation6], 1
    %s804 = scalar_lea.sflag [#allocation6], 1
    %805 = vsyncpa %s804, 1
    %806 = vsyncpa [#allocation9], 1
    %807 = vsyncpa [#allocation12], 1
    %808 = vsyncpa [#allocation7], 1
    %s809 = scalar_lea.sflag [#allocation7], 1
    %810 = vsyncpa %s809, 1

</llo_original>
